<compile_context>
chip_gen: v6e
topology: v6e:2x2x1
jax: 0.10.0
libtpu: 0.0.40
codegen_flags: <defaults>
</compile_context>

<pallas_src>
import jax
import jax.numpy as jnp
import numpy as np
from jax.experimental import pallas as pl
from jax.experimental.pallas import tpu as pltpu

LANE = 128


def _round_up(x, m):
    return ((x + m - 1) // m) * m


def _fold_bn_params(params):
    """Fold eval-mode BatchNorm scales into the conv weights (algebraically exact)."""
    w1, s1, b1, wd, s2, b2, w3, s3, b3 = params
    return w1 * s1, b1, wd * s2, b2, w3 * s3, b3


def _pick_b_tile(N, L, L_out, target_rows=512):
    """Batch elements folded per grid step into the MXU M dimension."""
    bt = max(1, min(N, target_rows // max(L, 1)))
    # Keep >= 2 grid steps when the batch allows it (feeds both v7x TensorCores and gives
    # the input/output pipeline something to overlap).
    while bt > 1 and pl.cdiv(N, bt) < 2:
        bt -= 1
    # The flattened (B_TILE*L, C) / (B_TILE*L_out, C) blocks need sublane (8) alignment
    # unless they cover the whole array.
    while bt > 1 and ((bt * L) % 8 or (bt * L_out) % 8):
        bt -= 1
    if (bt * L) % 8 or (bt * L_out) % 8:
        bt = N  # block == full array -> always legal
    return bt


def _make_kernel(B_TILE, L, L_full, L_out, K, stride, pad, use_res, matmul_dtype):
    def kernel(x_ref, w1_ref, b1_ref, wd_ref, b2_ref, w3_ref, b3_ref, o_ref):
        Hp = w1_ref.shape[-1]

        x = x_ref[...]                                                     # (B_TILE*L, Cp) f32

        # ---- 1x1 expand conv (BN1 scale pre-folded into w1) + bias + ReLU6 ------------
        y1 = jnp.dot(x.astype(matmul_dtype), w1_ref[...].astype(matmul_dtype),
                     preferred_element_type=jnp.float32)                   # (B_TILE*L, Hp)
        y1 = jnp.clip(y1 + b1_ref[...], 0.0, 6.0)

        # ---- depthwise K-tap conv (groups == hidden), entirely in registers -----------
        # Build the zero-padded activation in vregs (no VMEM scratch store/reload, no
        # full-buffer zeroing) and take K static sublane slices of it.
        y1 = y1.reshape(B_TILE, L, Hp)
        if pad > 0:
            halo = jnp.zeros((B_TILE, pad, Hp), jnp.float32)
            y1 = jnp.concatenate([halo, y1, halo], axis=1)                 # (B_TILE, L+2*pad, Hp)
        wd = wd_ref[...]                                                   # (K, Hp) loaded once
        acc = jnp.zeros((B_TILE, L_full, Hp), jnp.float32)
        for t in range(K):                                                 # K is static
            acc = acc + y1[:, t:t + L_full, :] * wd[t]                     # stride-1 resolution

        if stride == 1:
            y2 = acc                                                       # L_out == L_full
        else:
            # Downsample the stride-1 result via reshape rather than sublane-strided reads.
            need = L_out * stride
            if need > L_full:
                acc = jnp.concatenate(
                    [acc, jnp.zeros((B_TILE, need - L_full, Hp), jnp.float32)], axis=1)
            y2 = acc[:, :need, :].reshape(B_TILE, L_out, stride, Hp)[:, :, 0, :]

        y2 = jnp.clip(y2.reshape(B_TILE * L_out, Hp) + b2_ref[...], 0.0, 6.0)

        # ---- 1x1 project conv (BN3 scale pre-folded into w3) + bias + ReLU6 -----------
        y3 = jnp.dot(y2.astype(matmul_dtype), w3_ref[...].astype(matmul_dtype),
                     preferred_element_type=jnp.float32)                   # (B_TILE*L_out, Coutp)
        y3 = jnp.clip(y3 + b3_ref[...], 0.0, 6.0)

        if use_res:   # stride == 1 and C_in == C_out; padded channels are zero on both sides
            y3 = y3 + x

        o_ref[...] = y3.astype(o_ref.dtype)

    return kernel


def res_dep_sep_block(x_ncl, params, *, kernel_size, stride, matmul_dtype=jnp.bfloat16):
    """x_ncl: (N, C_in, L) float32 in PyTorch Conv1d layout. Returns (N, C_out, L_out)."""
    N, Cin, L = x_ncl.shape
    w1f, b1, wdf, b2, w3f, b3 = _fold_bn_params(params)
    H = w1f.shape[1]
    Cout = w3f.shape[1]
    K = kernel_size
    pad = K // 2                                          # matches int(kernel_size / 2)
    L_out = (L + 2 * pad - K) // stride + 1
    L_full = L + 2 * pad - K + 1                          # stride-1 (full resolution) length
    use_res = (stride == 1 and Cin == Cout)

    f32 = jnp.float32
    Cp = _round_up(Cin, LANE)
    Hp = _round_up(H, LANE)
    Coutp = _round_up(Cout, LANE)

    # Zero-pad every channel axis to lane width (padded channels stay exactly zero end-to-end).
    w1p = jnp.zeros((Cp, Hp), f32).at[:Cin, :H].set(w1f)
    wdp = jnp.zeros((K, Hp), f32).at[:, :H].set(wdf)
    w3p = jnp.zeros((Hp, Coutp), f32).at[:H, :Cout].set(w3f)
    b1p = jnp.zeros((1, Hp), f32).at[:, :H].set(b1)
    b2p = jnp.zeros((1, Hp), f32).at[:, :H].set(b2)
    b3p = jnp.zeros((1, Coutp), f32).at[:, :Cout].set(b3)

    # NCL -> NLC (channels on the lane axis), pad channels, flatten batch into the row axis.
    x_nlc = jnp.transpose(x_ncl, (0, 2, 1)).astype(f32)
    x_nlc = jnp.pad(x_nlc, ((0, 0), (0, 0), (0, Cp - Cin)))

    B_TILE = _pick_b_tile(N, L, L_out)
    Npad = _round_up(N, B_TILE)
    if Npad != N:
        x_nlc = jnp.pad(x_nlc, ((0, Npad - N), (0, 0), (0, 0)))
    x2d = x_nlc.reshape(Npad * L, Cp)

    kernel = _make_kernel(B_TILE, L, L_full, L_out, K, stride, pad, use_res, matmul_dtype)

    const = lambda shape: pl.BlockSpec(shape, lambda b: (0, 0))   # params stay VMEM-resident

    out2d = pl.pallas_call(
        kernel,
        out_shape=jax.ShapeDtypeStruct((Npad * L_out, Coutp), x_ncl.dtype),
        grid_spec=pltpu.PrefetchScalarGridSpec(
            num_scalar_prefetch=0,
            grid=(Npad // B_TILE,),
            in_specs=[
                pl.BlockSpec((B_TILE * L, Cp), lambda b: (b, 0)),
                const((Cp, Hp)), const((1, Hp)),
                const((K, Hp)), const((1, Hp)),
                const((Hp, Coutp)), const((1, Coutp)),
            ],
            out_specs=pl.BlockSpec((B_TILE * L_out, Coutp), lambda b: (b, 0)),
        ),
        compiler_params=pltpu.CompilerParams(
            dimension_semantics=("parallel",),
            vmem_limit_bytes=32 * 1024 * 1024,
        ),
    )(x2d, w1p, b1p, wdp, b2p, w3p, b3p)

    out = out2d.reshape(Npad, L_out, Coutp)[:N, :, :Cout]
    return jnp.transpose(out, (0, 2, 1))


def init_params(key, C_in, C_out, kernel_size, ratio=6, eps=1e-5):
    """Deterministic synthetic parameters; BN (eval mode) expressed as scale/shift."""
    H = C_in * ratio
    keys = jax.random.split(key, 15)

    # PyTorch weight shapes: conv1 (H,Cin,1)->(Cin,H); dw (H,1,K)->(K,H); conv3 (Cout,H,1)->(H,Cout)
    w1 = 0.2 * jax.random.normal(keys[0], (C_in, H), jnp.float32)
    wd = 0.2 * jax.random.normal(keys[1], (kernel_size, H), jnp.float32)
    w3 = 0.2 * jax.random.normal(keys[2], (H, C_out), jnp.float32)

    def bn_fold(kg, kb, km, kv, C):
        gamma = 1.0 + 0.1 * jax.random.normal(kg, (C,), jnp.float32)
        beta = 0.1 * jax.random.normal(kb, (C,), jnp.float32)
        mean = 0.1 * jax.random.normal(km, (C,), jnp.float32)
        var = jnp.abs(jax.random.normal(kv, (C,), jnp.float32)) + 0.5
        scale = gamma / jnp.sqrt(var + eps)
        shift = beta - mean * scale
        return scale.reshape(1, C), shift.reshape(1, C)

    s1, b1 = bn_fold(keys[3], keys[4], keys[5], keys[6], H)
    s2, b2 = bn_fold(keys[7], keys[8], keys[9], keys[10], H)
    s3, b3 = bn_fold(keys[11], keys[12], keys[13], keys[14], C_out)
    return (w1, s1, b1, wd, s2, b2, w3, s3, b3)


def ref_forward(x_ncl, params, *, kernel_size, stride):
    """Pure-JAX reference mirroring the PyTorch forward (BN in eval mode, scales folded)."""
    w1f, b1, wdf, b2, w3f, b3 = _fold_bn_params(params)
    x = jnp.transpose(x_ncl, (0, 2, 1)).astype(jnp.float32)   # NLC
    N, L, Cin = x.shape
    pad = kernel_size // 2
    L_out = (L + 2 * pad - kernel_size) // stride + 1

    y1 = jnp.clip(jnp.einsum('nlc,ch->nlh', x, w1f) + b1, 0.0, 6.0)
    y1p = jnp.pad(y1, ((0, 0), (pad, pad), (0, 0)))
    acc = jnp.zeros((N, L_out, y1.shape[-1]), jnp.float32)
    for t in range(kernel_size):
        acc = acc + y1p[:, t:t + L_out * stride:stride, :] * wdf[t]
    y2 = jnp.clip(acc + b2, 0.0, 6.0)
    y3 = jnp.clip(jnp.einsum('nlh,hc->nlc', y2, w3f) + b3, 0.0, 6.0)
    if stride == 1 and Cin == w3f.shape[1]:
        y3 = y3 + x
    return jnp.transpose(y3, (0, 2, 1))


if __name__ == "__main__":
    # Small shapes consistent with the module: batch=2, C_in=C_out=4, L=16, k=3, stride=1.
    N, C_in, C_out, L = 2, 4, 4, 16
    kernel_size, stride, ratio = 3, 1, 6

    key = jax.random.PRNGKey(0)
    kx, kp = jax.random.split(key)
    x = jax.random.normal(kx, (N, C_in, L), jnp.float32)
    params = init_params(kp, C_in, C_out, kernel_size, ratio=ratio)

    ref = jax.block_until_ready(ref_forward(x, params, kernel_size=kernel_size, stride=stride))

    # Exact-precision path (f32 MXU operands): tight check against the reference.
    out_f32 = jax.block_until_ready(
        res_dep_sep_block(x, params, kernel_size=kernel_size, stride=stride,
                          matmul_dtype=jnp.float32))
    assert out_f32.shape == ref.shape, (out_f32.shape, ref.shape)
    assert np.allclose(np.asarray(out_f32), np.asarray(ref), rtol=1e-5, atol=1e-5), \
        "f32 kernel mismatch vs reference"

    # Fast path (bf16 MXU operands, f32 accumulate + f32 elementwise): loose check (bf16 rounding).
    out_bf16 = jax.block_until_ready(
        res_dep_sep_block(x, params, kernel_size=kernel_size, stride=stride,
                          matmul_dtype=jnp.bfloat16))
    assert out_bf16.shape == ref.shape, (out_bf16.shape, ref.shape)
    assert np.allclose(np.asarray(out_bf16), np.asarray(ref), rtol=5e-2, atol=5e-2), \
        "bf16 kernel mismatch vs reference"

    print("KERNEL_OK")
</pallas_src>

<mosaic_0001>
module attributes {stable_mosaic.version = 11 : i64} {
  func.func @kernel(%arg0: i32, %arg1: memref<16x128xf32, #tpu.memory_space<vmem>>, %arg2: memref<128x128xf32, #tpu.memory_space<vmem>>, %arg3: memref<1x128xf32, #tpu.memory_space<vmem>>, %arg4: memref<3x128xf32, #tpu.memory_space<vmem>>, %arg5: memref<1x128xf32, #tpu.memory_space<vmem>>, %arg6: memref<128x128xf32, #tpu.memory_space<vmem>>, %arg7: memref<1x128xf32, #tpu.memory_space<vmem>>, %arg8: memref<16x128xf32, #tpu.memory_space<vmem>>) attributes {dimension_semantics = [#tpu.dimension_semantics<parallel>], iteration_bounds = array<i64: 2>, scalar_prefetch = 0 : i64, scratch_operands = 0 : i64, tpu.core_type = #tpu.core_type<tc>, window_params = [{transform_indices = @transform_0, window_bounds = array<i64: 16, 128>}, {pipeline_mode = #tpu.pipeline_mode<synchronous>, transform_indices = @transform_1, window_bounds = array<i64: 128, 128>}, {pipeline_mode = #tpu.pipeline_mode<synchronous>, transform_indices = @transform_2, window_bounds = array<i64: 1, 128>}, {pipeline_mode = #tpu.pipeline_mode<synchronous>, transform_indices = @transform_3, window_bounds = array<i64: 3, 128>}, {pipeline_mode = #tpu.pipeline_mode<synchronous>, transform_indices = @transform_4, window_bounds = array<i64: 1, 128>}, {pipeline_mode = #tpu.pipeline_mode<synchronous>, transform_indices = @transform_5, window_bounds = array<i64: 128, 128>}, {pipeline_mode = #tpu.pipeline_mode<synchronous>, transform_indices = @transform_6, window_bounds = array<i64: 1, 128>}, {transform_indices = @transform_7, window_bounds = array<i64: 16, 128>}]} {
    %c0 = arith.constant 0 : index
    %c0_0 = arith.constant 0 : index
    %0 = vector.load %arg1[%c0, %c0_0] : memref<16x128xf32, #tpu.memory_space<vmem>>, vector<16x128xf32>
    %c0_1 = arith.constant 0 : index
    %c0_2 = arith.constant 0 : index
    %1 = vector.load %arg2[%c0_1, %c0_2] : memref<128x128xf32, #tpu.memory_space<vmem>>, vector<128x128xf32>
    %cst = arith.constant dense<0.000000e+00> : vector<16x128xf32>
    %2 = tpu.matmul %0, %1, %cst {dimension_numbers = #tpu.dot_dimension_numbers<[1], [0], [0], [1], [0, 0, 1, 1], [], []>} : vector<16x128xf32>, vector<128x128xf32>, vector<16x128xf32> -> vector<16x128xf32>
    %c0_3 = arith.constant 0 : index
    %c0_4 = arith.constant 0 : index
    %3 = vector.load %arg3[%c0_3, %c0_4] : memref<1x128xf32, #tpu.memory_space<vmem>>, vector<1x128xf32>
    %4 = vector.broadcast %3 : vector<1x128xf32> to vector<16x128xf32>
    %5 = arith.addf %2, %4 : vector<16x128xf32>
    %cst_5 = arith.constant 0.000000e+00 : f32
    %cst_6 = arith.constant 6.000000e+00 : f32
    %6 = vector.broadcast %cst_5 : f32 to vector<16x128xf32>
    %7 = arith.maximumf %6, %5 : vector<16x128xf32>
    %8 = vector.broadcast %cst_6 : f32 to vector<16x128xf32>
    %9 = arith.minimumf %8, %7 : vector<16x128xf32>
    %10 = vector.shape_cast %9 : vector<16x128xf32> to vector<1x16x128xf32>
    %cst_7 = arith.constant 0.000000e+00 : f32
    %11 = vector.broadcast %cst_7 : f32 to vector<1x1x128xf32>
    %12 = tpu.concatenate %11, %10, %11 in 1 : vector<1x1x128xf32>, vector<1x16x128xf32>, vector<1x1x128xf32> -> vector<1x18x128xf32>
    %c0_8 = arith.constant 0 : index
    %c0_9 = arith.constant 0 : index
    %13 = vector.load %arg4[%c0_8, %c0_9] : memref<3x128xf32, #tpu.memory_space<vmem>>, vector<3x128xf32>
    %cst_10 = arith.constant 0.000000e+00 : f32
    %14 = vector.broadcast %cst_10 : f32 to vector<1x16x128xf32>
    %15 = vector.extract_strided_slice %12 {offsets = [0, 0, 0], sizes = [1, 16, 128], strides = [1, 1, 1]} : vector<1x18x128xf32> to vector<1x16x128xf32>
    %16 = vector.extract_strided_slice %13 {offsets = [0, 0], sizes = [1, 128], strides = [1, 1]} : vector<3x128xf32> to vector<1x128xf32>
    %17 = vector.shape_cast %16 : vector<1x128xf32> to vector<128xf32>
    %18 = vector.shape_cast %17 : vector<128xf32> to vector<1x1x128xf32>
    %19 = vector.broadcast %18 : vector<1x1x128xf32> to vector<1x16x128xf32>
    %20 = arith.mulf %15, %19 : vector<1x16x128xf32>
    %21 = arith.addf %14, %20 : vector<1x16x128xf32>
    %22 = vector.extract_strided_slice %12 {offsets = [0, 1, 0], sizes = [1, 16, 128], strides = [1, 1, 1]} : vector<1x18x128xf32> to vector<1x16x128xf32>
    %23 = vector.extract_strided_slice %13 {offsets = [1, 0], sizes = [1, 128], strides = [1, 1]} : vector<3x128xf32> to vector<1x128xf32>
    %24 = vector.shape_cast %23 : vector<1x128xf32> to vector<128xf32>
    %25 = vector.shape_cast %24 : vector<128xf32> to vector<1x1x128xf32>
    %26 = vector.broadcast %25 : vector<1x1x128xf32> to vector<1x16x128xf32>
    %27 = arith.mulf %22, %26 : vector<1x16x128xf32>
    %28 = arith.addf %21, %27 : vector<1x16x128xf32>
    %29 = vector.extract_strided_slice %12 {offsets = [0, 2, 0], sizes = [1, 16, 128], strides = [1, 1, 1]} : vector<1x18x128xf32> to vector<1x16x128xf32>
    %30 = vector.extract_strided_slice %13 {offsets = [2, 0], sizes = [1, 128], strides = [1, 1]} : vector<3x128xf32> to vector<1x128xf32>
    %31 = vector.shape_cast %30 : vector<1x128xf32> to vector<128xf32>
    %32 = vector.shape_cast %31 : vector<128xf32> to vector<1x1x128xf32>
    %33 = vector.broadcast %32 : vector<1x1x128xf32> to vector<1x16x128xf32>
    %34 = arith.mulf %29, %33 : vector<1x16x128xf32>
    %35 = arith.addf %28, %34 : vector<1x16x128xf32>
    %36 = vector.shape_cast %35 : vector<1x16x128xf32> to vector<16x128xf32>
    %c0_11 = arith.constant 0 : index
    %c0_12 = arith.constant 0 : index
    %37 = vector.load %arg5[%c0_11, %c0_12] : memref<1x128xf32, #tpu.memory_space<vmem>>, vector<1x128xf32>
    %38 = vector.broadcast %37 : vector<1x128xf32> to vector<16x128xf32>
    %39 = arith.addf %36, %38 : vector<16x128xf32>
    %cst_13 = arith.constant 0.000000e+00 : f32
    %cst_14 = arith.constant 6.000000e+00 : f32
    %40 = vector.broadcast %cst_13 : f32 to vector<16x128xf32>
    %41 = arith.maximumf %40, %39 : vector<16x128xf32>
    %42 = vector.broadcast %cst_14 : f32 to vector<16x128xf32>
    %43 = arith.minimumf %42, %41 : vector<16x128xf32>
    %c0_15 = arith.constant 0 : index
    %c0_16 = arith.constant 0 : index
    %44 = vector.load %arg6[%c0_15, %c0_16] : memref<128x128xf32, #tpu.memory_space<vmem>>, vector<128x128xf32>
    %cst_17 = arith.constant dense<0.000000e+00> : vector<16x128xf32>
    %45 = tpu.matmul %43, %44, %cst_17 {dimension_numbers = #tpu.dot_dimension_numbers<[1], [0], [0], [1], [0, 0, 1, 1], [], []>} : vector<16x128xf32>, vector<128x128xf32>, vector<16x128xf32> -> vector<16x128xf32>
    %c0_18 = arith.constant 0 : index
    %c0_19 = arith.constant 0 : index
    %46 = vector.load %arg7[%c0_18, %c0_19] : memref<1x128xf32, #tpu.memory_space<vmem>>, vector<1x128xf32>
    %47 = vector.broadcast %46 : vector<1x128xf32> to vector<16x128xf32>
    %48 = arith.addf %45, %47 : vector<16x128xf32>
    %cst_20 = arith.constant 0.000000e+00 : f32
    %cst_21 = arith.constant 6.000000e+00 : f32
    %49 = vector.broadcast %cst_20 : f32 to vector<16x128xf32>
    %50 = arith.maximumf %49, %48 : vector<16x128xf32>
    %51 = vector.broadcast %cst_21 : f32 to vector<16x128xf32>
    %52 = arith.minimumf %51, %50 : vector<16x128xf32>
    %53 = arith.addf %52, %0 : vector<16x128xf32>
    %c0_22 = arith.constant 0 : index
    %c0_23 = arith.constant 0 : index
    %54 = vector.load %arg8[%c0_22, %c0_23] : memref<16x128xf32, #tpu.memory_space<vmem>>, vector<16x128xf32>
    tpu.vector_store %arg8[%c0_22, %c0_23], %53 {strides = array<i32>} : memref<16x128xf32, #tpu.memory_space<vmem>>, vector<16x128xf32>,
    return
  }
  func.func @transform_0(%arg0: i32) -> (i32, i32) {
    %c0_i32 = arith.constant 0 : i32
    %c0_i32_0 = arith.constant 0 : i32
    return %arg0, %c0_i32 : i32, i32
  }
  func.func @transform_1(%arg0: i32) -> (i32, i32) {
    %c0_i32 = arith.constant 0 : i32
    %c0_i32_0 = arith.constant 0 : i32
    %c0_i32_1 = arith.constant 0 : i32
    return %c0_i32, %c0_i32_0 : i32, i32
  }
  func.func @transform_2(%arg0: i32) -> (i32, i32) {
    %c0_i32 = arith.constant 0 : i32
    %c0_i32_0 = arith.constant 0 : i32
    %c0_i32_1 = arith.constant 0 : i32
    return %c0_i32, %c0_i32_0 : i32, i32
  }
  func.func @transform_3(%arg0: i32) -> (i32, i32) {
    %c0_i32 = arith.constant 0 : i32
    %c0_i32_0 = arith.constant 0 : i32
    %c0_i32_1 = arith.constant 0 : i32
    return %c0_i32, %c0_i32_0 : i32, i32
  }
  func.func @transform_4(%arg0: i32) -> (i32, i32) {
    %c0_i32 = arith.constant 0 : i32
    %c0_i32_0 = arith.constant 0 : i32
    %c0_i32_1 = arith.constant 0 : i32
    return %c0_i32, %c0_i32_0 : i32, i32
  }
  func.func @transform_5(%arg0: i32) -> (i32, i32) {
    %c0_i32 = arith.constant 0 : i32
    %c0_i32_0 = arith.constant 0 : i32
    %c0_i32_1 = arith.constant 0 : i32
    return %c0_i32, %c0_i32_0 : i32, i32
  }
  func.func @transform_6(%arg0: i32) -> (i32, i32) {
    %c0_i32 = arith.constant 0 : i32
    %c0_i32_0 = arith.constant 0 : i32
    %c0_i32_1 = arith.constant 0 : i32
    return %c0_i32, %c0_i32_0 : i32, i32
  }
  func.func @transform_7(%arg0: i32) -> (i32, i32) {
    %c0_i32 = arith.constant 0 : i32
    %c0_i32_0 = arith.constant 0 : i32
    return %arg0, %c0_i32 : i32, i32
  }
}

</mosaic_0001>

<llo_original>
// kernel: tpu_custom_call.1
$region0: #{tpu_custom_call.1}
  #allocation0 [shape = 'u32[]', space=smem, size = 0x4, offset = 0x4, fixed_abs, tag = 'smem constant byte address 0x4 - core index']
  #allocation1 [shape = 'u32[144,128]{1,0:T(1,128)}', space=vmem, size = 0x12000, scoped, tag = 'internal scratch']
  %s0 = inlined_call_operand.hbm [shape: f32[32,128], index: 0, kind: input, shape index: {}]
  %s1 = inlined_call_operand.hbm [shape: f32[128,128], index: 1, kind: input, shape index: {}]
  %s2 = inlined_call_operand.vmem [shape: f32[1,128], index: 2, kind: input, shape index: {}]
  %s3 = inlined_call_operand.vmem [shape: f32[3,128], index: 3, kind: input, shape index: {}]
  %s4 = inlined_call_operand.vmem [shape: f32[1,128], index: 4, kind: input, shape index: {}]
  %s5 = inlined_call_operand.hbm [shape: f32[128,128], index: 5, kind: input, shape index: {}]
  %s6 = inlined_call_operand.vmem [shape: f32[1,128], index: 6, kind: input, shape index: {}]
  %s7 = inlined_call_operand.hbm [shape: f32[32,128], index: 7, kind: output, shape index: {}]
  %s8 = sld [smem:[#allocation0]]
  $region73: #{tpu_custom_call.1} parent=0
    _
  %s10 = ssub.s32 1, %s8
  %s11 = scalar_select 0, %s10, %s8
  $region1: #{tpu_custom_call.1} parent=0
    #allocation2 [shape = 'u8[16384]{0}', space=vmem, size = 0x4000, scoped, tag = 'input window, operand 0']
    #allocation3 [shape = 's32[2]{0}', space=sflag, size = 0x8, scoped, tag = 'scoped memory for tpu_custom_call.1']
    #allocation4 [shape = 's32[2]{0}', space=sflag, size = 0x8, scoped, tag = 'scoped memory for tpu_custom_call.1']
    #allocation5 [shape = 'u8[65536]{0}', space=vmem, size = 0x10000, scoped, tag = 'input window, operand 1, single buffered']
    #allocation6 [shape = 's32[1]{0}', space=sflag, size = 0x4, scoped, tag = 'scoped memory for tpu_custom_call.1']
    #allocation7 [shape = 'u8[65536]{0}', space=vmem, size = 0x10000, scoped, tag = 'input window, operand 5, single buffered']
    #allocation8 [shape = 'u8[16384]{0}', space=vmem, size = 0x4000, scoped, tag = 'output window, operand 0']
    %12 = vsyncpa [#allocation3], 0
    %s13 = scalar_lea.sflag [#allocation3], 1
    %14 = vsyncpa %s13, 0
    %15 = vsyncpa [#allocation6], 0
    %16 = vsyncpa [#allocation4], 0
    %s17 = scalar_lea.sflag [#allocation4], 1
    %18 = vsyncpa %s17, 0
    loop: start=0, step=1, limit=4
    $region2: #{tpu_custom_call.1} parent=1 // loop_pre_header
      _
    $region3: #{tpu_custom_call.1} parent=1 // loop_header
      %s20 = sphi 0, %s24
      %p21 = scmp.ge.s32.totalorder %s20, 4
      %s30 = sphi 0, %s32
      %s33 = sphi 0, %s30
      %s34 = sphi 0, %s33
      %s50 = sphi 0, %s34
      %s54 = sphi 0, %s54
      %s56 = sphi 0, %s54
      %s57 = sphi 0, %s56
      %s71 = sphi 0, %s57
      %s75 = sphi 0, %s75
      %s77 = sphi 0, %s75
      %s78 = sphi 0, %s77
      %s92 = sphi 0, %s78
      %s96 = sphi 0, %s96
      %s98 = sphi 0, %s96
      %s99 = sphi 0, %s98
      %s113 = sphi 0, %s99
      %s117 = sphi 0, %s117
      %s119 = sphi 0, %s117
      %s120 = sphi 0, %s119
      %s134 = sphi 0, %s120
      %s138 = sphi 0, %s138
      %s140 = sphi 0, %s138
      %s141 = sphi 0, %s140
      %s155 = sphi 0, %s141
      %s159 = sphi 0, %s159
      %s161 = sphi 0, %s159
      %s162 = sphi 0, %s161
      %s176 = sphi 0, %s162
      %s182 = sphi 0, %s184
      %s185 = sphi 0, %s182
      %s186 = sphi 0, %s185
      %s202 = sphi 0, %s186
    $region4: #{tpu_custom_call.1} parent=1 // loop_header_branch
      %23 = sbr.rel (%p21) target = $region8
    $region5: #{tpu_custom_call.1} parent=1 // loop_body
      %s25 = ssub.s32 %s20, 1
      %s26 = ssub.s32 %s20, 2
      %s27 = sadd.s32 %s20, 1
      %s28 = ssub.s32 %s20, %s27
      %p29 = scmp.eq.s32.totalorder %s28, 0
      %s31 = sadd.s32 %s30, 1
      %s32 = scalar_select %p29, %s30, %s31
      %p35 = pneg %p29
      %p36 = scmp.eq.s32.totalorder %s20, 1
      %p37 = por %p35, %p36
      %p38 = scmp.ne.s32.totalorder %s30, %s33
      %p39 = scmp.eq.s32.totalorder %s20, 0
      %p40 = por %p38, %p39
      %p41 = scmp.ne.s32.totalorder %s30, %s33
      %p42 = scmp.eq.s32.totalorder %s25, 1
      %p43 = por %p41, %p42
      %p44 = scmp.ne.s32.totalorder %s33, %s34
      %p45 = scmp.eq.s32.totalorder %s25, 0
      %p46 = por %p44, %p45
      %p47 = scmp.ne.s32.totalorder %s33, %s34
      %p48 = scmp.eq.s32.totalorder %s26, 1
      %p49 = por %p47, %p48
      %p51 = scmp.ne.s32.totalorder %s34, %s50
      %p52 = scmp.eq.s32.totalorder %s26, 0
      %p53 = por %p51, %p52
      %s55 = sadd.s32 %s54, 1
      %p58 = scmp.eq.s32.totalorder %s20, 1
      %p59 = scmp.ne.s32.totalorder %s54, %s56
      %p60 = scmp.eq.s32.totalorder %s20, 0
      %p61 = por %p59, %p60
      %p62 = scmp.ne.s32.totalorder %s54, %s56
      %p63 = scmp.eq.s32.totalorder %s25, 1
      %p64 = por %p62, %p63
      %p65 = scmp.ne.s32.totalorder %s56, %s57
      %p66 = scmp.eq.s32.totalorder %s25, 0
      %p67 = por %p65, %p66
      %p68 = scmp.ne.s32.totalorder %s56, %s57
      %p69 = scmp.eq.s32.totalorder %s26, 1
      %p70 = por %p68, %p69
      %p72 = scmp.ne.s32.totalorder %s57, %s71
      %p73 = scmp.eq.s32.totalorder %s26, 0
      %p74 = por %p72, %p73
      %s76 = sadd.s32 %s75, 1
      %p79 = scmp.eq.s32.totalorder %s20, 1
      %p80 = scmp.ne.s32.totalorder %s75, %s77
      %p81 = scmp.eq.s32.totalorder %s20, 0
      %p82 = por %p80, %p81
      %p83 = scmp.ne.s32.totalorder %s75, %s77
      %p84 = scmp.eq.s32.totalorder %s25, 1
      %p85 = por %p83, %p84
      %p86 = scmp.ne.s32.totalorder %s77, %s78
      %p87 = scmp.eq.s32.totalorder %s25, 0
      %p88 = por %p86, %p87
      %p89 = scmp.ne.s32.totalorder %s77, %s78
      %p90 = scmp.eq.s32.totalorder %s26, 1
      %p91 = por %p89, %p90
      %p93 = scmp.ne.s32.totalorder %s78, %s92
      %p94 = scmp.eq.s32.totalorder %s26, 0
      %p95 = por %p93, %p94
      %s97 = sadd.s32 %s96, 1
      %p100 = scmp.eq.s32.totalorder %s20, 1
      %p101 = scmp.ne.s32.totalorder %s96, %s98
      %p102 = scmp.eq.s32.totalorder %s20, 0
      %p103 = por %p101, %p102
      %p104 = scmp.ne.s32.totalorder %s96, %s98
      %p105 = scmp.eq.s32.totalorder %s25, 1
      %p106 = por %p104, %p105
      %p107 = scmp.ne.s32.totalorder %s98, %s99
      %p108 = scmp.eq.s32.totalorder %s25, 0
      %p109 = por %p107, %p108
      %p110 = scmp.ne.s32.totalorder %s98, %s99
      %p111 = scmp.eq.s32.totalorder %s26, 1
      %p112 = por %p110, %p111
      %p114 = scmp.ne.s32.totalorder %s99, %s113
      %p115 = scmp.eq.s32.totalorder %s26, 0
      %p116 = por %p114, %p115
      %s118 = sadd.s32 %s117, 1
      %p121 = scmp.eq.s32.totalorder %s20, 1
      %p122 = scmp.ne.s32.totalorder %s117, %s119
      %p123 = scmp.eq.s32.totalorder %s20, 0
      %p124 = por %p122, %p123
      %p125 = scmp.ne.s32.totalorder %s117, %s119
      %p126 = scmp.eq.s32.totalorder %s25, 1
      %p127 = por %p125, %p126
      %p128 = scmp.ne.s32.totalorder %s119, %s120
      %p129 = scmp.eq.s32.totalorder %s25, 0
      %p130 = por %p128, %p129
      %p131 = scmp.ne.s32.totalorder %s119, %s120
      %p132 = scmp.eq.s32.totalorder %s26, 1
      %p133 = por %p131, %p132
      %p135 = scmp.ne.s32.totalorder %s120, %s134
      %p136 = scmp.eq.s32.totalorder %s26, 0
      %p137 = por %p135, %p136
      %s139 = sadd.s32 %s138, 1
      %p142 = scmp.eq.s32.totalorder %s20, 1
      %p143 = scmp.ne.s32.totalorder %s138, %s140
      %p144 = scmp.eq.s32.totalorder %s20, 0
      %p145 = por %p143, %p144
      %p146 = scmp.ne.s32.totalorder %s138, %s140
      %p147 = scmp.eq.s32.totalorder %s25, 1
      %p148 = por %p146, %p147
      %p149 = scmp.ne.s32.totalorder %s140, %s141
      %p150 = scmp.eq.s32.totalorder %s25, 0
      %p151 = por %p149, %p150
      %p152 = scmp.ne.s32.totalorder %s140, %s141
      %p153 = scmp.eq.s32.totalorder %s26, 1
      %p154 = por %p152, %p153
      %p156 = scmp.ne.s32.totalorder %s141, %s155
      %p157 = scmp.eq.s32.totalorder %s26, 0
      %p158 = por %p156, %p157
      %s160 = sadd.s32 %s159, 1
      %p163 = scmp.eq.s32.totalorder %s20, 1
      %p164 = scmp.ne.s32.totalorder %s159, %s161
      %p165 = scmp.eq.s32.totalorder %s20, 0
      %p166 = por %p164, %p165
      %p167 = scmp.ne.s32.totalorder %s159, %s161
      %p168 = scmp.eq.s32.totalorder %s25, 1
      %p169 = por %p167, %p168
      %p170 = scmp.ne.s32.totalorder %s161, %s162
      %p171 = scmp.eq.s32.totalorder %s25, 0
      %p172 = por %p170, %p171
      %p173 = scmp.ne.s32.totalorder %s161, %s162
      %p174 = scmp.eq.s32.totalorder %s26, 1
      %p175 = por %p173, %p174
      %p177 = scmp.ne.s32.totalorder %s162, %s176
      %p178 = scmp.eq.s32.totalorder %s26, 0
      %p179 = por %p177, %p178
      %s180 = ssub.s32 %s20, %s27
      %p181 = scmp.eq.s32.totalorder %s180, 0
      %s183 = sadd.s32 %s182, 1
      %s184 = scalar_select %p181, %s182, %s183
      %p187 = pneg %p181
      %p188 = scmp.eq.s32.totalorder %s20, 1
      %p189 = por %p187, %p188
      %p190 = scmp.ne.s32.totalorder %s182, %s185
      %p191 = scmp.eq.s32.totalorder %s20, 0
      %p192 = por %p190, %p191
      %p193 = scmp.ne.s32.totalorder %s182, %s185
      %p194 = scmp.eq.s32.totalorder %s25, 1
      %p195 = por %p193, %p194
      %p196 = scmp.ne.s32.totalorder %s185, %s186
      %p197 = scmp.eq.s32.totalorder %s25, 0
      %p198 = por %p196, %p197
      %p199 = scmp.ne.s32.totalorder %s185, %s186
      %p200 = scmp.eq.s32.totalorder %s26, 1
      %p201 = por %p199, %p200
      %p203 = scmp.ne.s32.totalorder %s186, %s202
      %p204 = scmp.eq.s32.totalorder %s26, 0
      %p205 = por %p203, %p204
      %p206 = scmp.le.s32.totalorder 1, %s20
      %p207 = scmp.lt.s32.totalorder %s20, 3
      %p208 = pnand %p206, %p207
      %p209 = pneg %p208
      // Predicated region
      $region9: #{tpu_custom_call.1} parent=5 // pred_check
        _
      $region10: #{tpu_custom_call.1} parent=5 // pred_check_branch
        %211 = sbr.rel (%p208) target = $region12
      $region11: #{tpu_custom_call.1} parent=5 // pred_region
        %s212 = ssub.s32 %s20, 1
        // Predicated region
        $region13: #{tpu_custom_call.1} parent=11 // pred_check
          %p213 = pneg %p67
        $region14: #{tpu_custom_call.1} parent=11 // pred_check_branch
          %215 = sbr.rel (%p213) target = $region16
        $region15: #{tpu_custom_call.1} parent=11 // pred_region
          %s217 = ssub.s32 2048, 2048
          %218 = vsyncadd [#allocation6], %s217
          %s219 = sshll.u32 [#allocation5], 4
          %s220 = int_to_ptr.vmem [resolvable:$true] %s219
          %225 = dma.hbm_to_vmem [thread:$0]  %s1, 2048, %s220, [#allocation6], 128, 128, 8
        $region16: #{tpu_custom_call.1} parent=11 // pred_fallthru
          _
        // Predicated region
        $region17: #{tpu_custom_call.1} parent=11 // pred_check
          %p226 = pneg %p88
        $region18: #{tpu_custom_call.1} parent=11 // pred_check_branch
          %228 = sbr.rel (%p226) target = $region20
        $region19: #{tpu_custom_call.1} parent=11 // pred_region
          _
        $region20: #{tpu_custom_call.1} parent=11 // pred_fallthru
          _
        // Predicated region
        $region21: #{tpu_custom_call.1} parent=11 // pred_check
          %p229 = pneg %p109
        $region22: #{tpu_custom_call.1} parent=11 // pred_check_branch
          %231 = sbr.rel (%p229) target = $region24
        $region23: #{tpu_custom_call.1} parent=11 // pred_region
          _
        $region24: #{tpu_custom_call.1} parent=11 // pred_fallthru
          _
        // Predicated region
        $region25: #{tpu_custom_call.1} parent=11 // pred_check
          %p232 = pneg %p130
        $region26: #{tpu_custom_call.1} parent=11 // pred_check_branch
          %234 = sbr.rel (%p232) target = $region28
        $region27: #{tpu_custom_call.1} parent=11 // pred_region
          _
        $region28: #{tpu_custom_call.1} parent=11 // pred_fallthru
          _
        // Predicated region
        $region29: #{tpu_custom_call.1} parent=11 // pred_check
          %p235 = pneg %p151
        $region30: #{tpu_custom_call.1} parent=11 // pred_check_branch
          %237 = sbr.rel (%p235) target = $region32
        $region31: #{tpu_custom_call.1} parent=11 // pred_region
          %s239 = ssub.s32 2048, 2048
          %240 = vsyncadd [#allocation6], %s239
          %s241 = sshll.u32 [#allocation7], 4
          %s242 = int_to_ptr.vmem [resolvable:$true] %s241
          %247 = dma.hbm_to_vmem [thread:$0]  %s5, 2048, %s242, [#allocation6], 128, 128, 8
        $region32: #{tpu_custom_call.1} parent=11 // pred_fallthru
          _
        // Predicated region
        $region33: #{tpu_custom_call.1} parent=11 // pred_check
          %p248 = pneg %p172
        $region34: #{tpu_custom_call.1} parent=11 // pred_check_branch
          %250 = sbr.rel (%p248) target = $region36
        $region35: #{tpu_custom_call.1} parent=11 // pred_region
          _
        $region36: #{tpu_custom_call.1} parent=11 // pred_fallthru
          _
      $region12: #{tpu_custom_call.1} parent=5 // pred_fallthru
        _
      %p251 = scmp.lt.s32.totalorder %s20, 2
      // Predicated region
      $region37: #{tpu_custom_call.1} parent=5 // pred_check
        %p252 = pneg %p251
      $region38: #{tpu_custom_call.1} parent=5 // pred_check_branch
        %254 = sbr.rel (%p252) target = $region40
      $region39: #{tpu_custom_call.1} parent=5 // pred_region
        // Predicated region
        $region41: #{tpu_custom_call.1} parent=39 // pred_check
          %p255 = pneg %p40
        $region42: #{tpu_custom_call.1} parent=39 // pred_check_branch
          %257 = sbr.rel (%p255) target = $region44
        $region43: #{tpu_custom_call.1} parent=39 // pred_region
          %s258 = sand.u32 %s30, 1
          %s259 = scalar_lea.sflag [#allocation3], %s258
          %s260 = sand.u32 %s30, 1
          %s261 = smul.addr %s260, 16
          %s262 = scalar_lea.vmem [#allocation2], %s261
          %s263 = smul.u32 2, %s20
          %s265 = ssub.s32 256, 256
          %266 = vsyncadd %s259, %s265
          %s267 = smul.addr %s263, 128
          %s268 = scalar_lea.hbm %s0, %s267
          %s269 = sshll.u32 %s262, 4
          %s270 = int_to_ptr.vmem [resolvable:$true] %s269
          %275 = dma.hbm_to_vmem [thread:$0]  %s268, 256, %s270, %s259, 128, 128, 8
        $region44: #{tpu_custom_call.1} parent=39 // pred_fallthru
          _
      $region40: #{tpu_custom_call.1} parent=5 // pred_fallthru
        _
      %p276 = scmp.le.s32.totalorder 1, %s20
      %p277 = scmp.lt.s32.totalorder %s20, 3
      %p278 = pnand %p276, %p277
      %p279 = pneg %p278
      // Predicated region
      $region45: #{tpu_custom_call.1} parent=5 // pred_check
        _
      $region46: #{tpu_custom_call.1} parent=5 // pred_check_branch
        %281 = sbr.rel (%p278) target = $region48
      $region47: #{tpu_custom_call.1} parent=5 // pred_region
        %s282 = ssub.s32 %s20, 1
        %s283 = sand.u32 %s33, 1
        %s284 = scalar_lea.sflag [#allocation3], %s283
        %s285 = sand.u32 %s33, 1
        %s286 = smul.addr %s285, 16
        %s287 = scalar_lea.vmem [#allocation2], %s286
        // Predicated region
        $region49: #{tpu_custom_call.1} parent=47 // pred_check
          %p288 = pneg %p46
        $region50: #{tpu_custom_call.1} parent=47 // pred_check_branch
          %290 = sbr.rel (%p288) target = $region52
        $region51: #{tpu_custom_call.1} parent=47 // pred_region
          %291 = dma.done %s284, 256
        $region52: #{tpu_custom_call.1} parent=47 // pred_fallthru
          _
        // Predicated region
        $region53: #{tpu_custom_call.1} parent=47 // pred_check
          %p292 = pneg %p67
        $region54: #{tpu_custom_call.1} parent=47 // pred_check_branch
          %294 = sbr.rel (%p292) target = $region56
        $region55: #{tpu_custom_call.1} parent=47 // pred_region
          %295 = dma.done [#allocation6], 2048
        $region56: #{tpu_custom_call.1} parent=47 // pred_fallthru
          _
        // Predicated region
        $region57: #{tpu_custom_call.1} parent=47 // pred_check
          %p296 = pneg %p151
        $region58: #{tpu_custom_call.1} parent=47 // pred_check_branch
          %298 = sbr.rel (%p296) target = $region60
        $region59: #{tpu_custom_call.1} parent=47 // pred_region
          %299 = dma.done [#allocation6], 2048
        $region60: #{tpu_custom_call.1} parent=47 // pred_fallthru
          _
        %s300 = sand.u32 %s33, 1
        %s301 = scalar_lea.sflag [#allocation3], %s300
        %s302 = sand.u32 %s33, 1
        %s303 = smul.addr %s302, 16
        %s304 = scalar_lea.vmem [#allocation2], %s303
        %p305 = pneg %p46
        %p306 = pneg %p43
        %p307 = pneg %p67
        %p308 = pneg %p64
        %p309 = pneg %p88
        %p310 = pneg %p85
        %p311 = pneg %p109
        %p312 = pneg %p106
        %p313 = pneg %p130
        %p314 = pneg %p127
        %p315 = pneg %p151
        %p316 = pneg %p148
        %p317 = pneg %p172
        %p318 = pneg %p169
        %p319 = pneg %p198
        %p320 = pneg %p195
        %s321 = sand.u32 %s185, 1
        %s322 = scalar_lea.sflag [#allocation4], %s321
        %s323 = sand.u32 %s185, 1
        %s324 = smul.addr %s323, 16
        %s325 = scalar_lea.vmem [#allocation8], %s324
        %s326 = smul.u32 2, %s25
        %s327 = smul.u32 2, %s25
        %v328 = vld [vmem:[%s287] sm:$0xff]
        %v329 = vld [vmem:[%s287 + $0x8] sm:$0xff]
        %v330 = vld [vmem:[#allocation5] sm:$0xff]
        %v331 = vld [vmem:[#allocation5 + $0x8] sm:$0xff]
        %v332 = vld [vmem:[#allocation5 + $0x10] sm:$0xff]
        %v333 = vld [vmem:[#allocation5 + $0x18] sm:$0xff]
        %v334 = vld [vmem:[#allocation5 + $0x20] sm:$0xff]
        %v335 = vld [vmem:[#allocation5 + $0x28] sm:$0xff]
        %v336 = vld [vmem:[#allocation5 + $0x30] sm:$0xff]
        %v337 = vld [vmem:[#allocation5 + $0x38] sm:$0xff]
        %v338 = vld [vmem:[#allocation5 + $0x40] sm:$0xff]
        %v339 = vld [vmem:[#allocation5 + $0x48] sm:$0xff]
        %v340 = vld [vmem:[#allocation5 + $0x50] sm:$0xff]
        %v341 = vld [vmem:[#allocation5 + $0x58] sm:$0xff]
        %v342 = vld [vmem:[#allocation5 + $0x60] sm:$0xff]
        %v343 = vld [vmem:[#allocation5 + $0x68] sm:$0xff]
        %v344 = vld [vmem:[#allocation5 + $0x70] sm:$0xff]
        %v345 = vld [vmem:[#allocation5 + $0x78] sm:$0xff]
        %v346 = vld [vmem:[%s2] sm:$0x1]
        %v348 = vlaneseq
        %v349 = vshrl.u32 %v348, 7
        %v350 = vsub.s32 0, %v349
        %v351 = vrot.slane %v346, %v350
        %353 = vmatprep.subr.mxu0 0.0
        %354 = vmatpush1.msra.mxu0 %v345
        %355 = vmatprep.subr.mxu0 0.0
        %356 = vmatpush1.msra.mxu0 %v344
        %357 = vmatprep.subr.mxu0 0.0
        %358 = vmatpush1.msra.mxu0 %v343
        %359 = vmatprep.subr.mxu0 0.0
        %360 = vmatpush1.msra.mxu0 %v342
        %361 = vmatprep.subr.mxu0 0.0
        %362 = vmatpush1.msra.mxu0 %v341
        %363 = vmatprep.subr.mxu0 0.0
        %364 = vmatpush1.msra.mxu0 %v340
        %365 = vmatprep.subr.mxu0 0.0
        %366 = vmatpush1.msra.mxu0 %v339
        %367 = vmatprep.subr.mxu0 0.0
        %368 = vmatpush1.msra.mxu0 %v338
        %369 = vmatprep.subr.mxu0 0.0
        %370 = vmatpush1.msra.mxu0 %v337
        %371 = vmatprep.subr.mxu0 0.0
        %372 = vmatpush1.msra.mxu0 %v336
        %373 = vmatprep.subr.mxu0 0.0
        %374 = vmatpush1.msra.mxu0 %v335
        %375 = vmatprep.subr.mxu0 0.0
        %376 = vmatpush1.msra.mxu0 %v334
        %377 = vmatprep.subr.mxu0 0.0
        %378 = vmatpush1.msra.mxu0 %v333
        %379 = vmatprep.subr.mxu0 0.0
        %380 = vmatpush1.msra.mxu0 %v332
        %381 = vmatprep.subr.mxu0 0.0
        %382 = vmatpush1.msra.mxu0 %v331
        %383 = vmatprep.subr.mxu0 0.0
        %384 = vmatpush1.msra.mxu0 %v330
        %385 = vmatprep.subr.mxu0 0.0
        %386 = vmatpush2.msra.mxu0 0.0
        %387 = vmatprep.subr.mxu0 0.0
        %388 = vmatpush2.msra.mxu0 0.0
        %389 = vmatprep.subr.mxu0 0.0
        %390 = vmatpush2.msra.mxu0 0.0
        %391 = vmatprep.subr.mxu0 0.0
        %392 = vmatpush2.msra.mxu0 0.0
        %393 = vmatprep.subr.mxu0 0.0
        %394 = vmatpush2.msra.mxu0 0.0
        %395 = vmatprep.subr.mxu0 0.0
        %396 = vmatpush2.msra.mxu0 0.0
        %397 = vmatprep.subr.mxu0 0.0
        %398 = vmatpush2.msra.mxu0 0.0
        %399 = vmatprep.subr.mxu0 0.0
        %400 = vmatpush2.msra.mxu0 0.0
        %401 = vmatprep.subr.mxu0 0.0
        %402 = vmatpush2.msra.mxu0 0.0
        %403 = vmatprep.subr.mxu0 0.0
        %404 = vmatpush2.msra.mxu0 0.0
        %405 = vmatprep.subr.mxu0 0.0
        %406 = vmatpush2.msra.mxu0 0.0
        %407 = vmatprep.subr.mxu0 0.0
        %408 = vmatpush2.msra.mxu0 0.0
        %409 = vmatprep.subr.mxu0 0.0
        %410 = vmatpush2.msra.mxu0 0.0
        %411 = vmatprep.subr.mxu0 0.0
        %412 = vmatpush2.msra.mxu0 0.0
        %413 = vmatprep.subr.mxu0 0.0
        %414 = vmatpush2.msra.mxu0 0.0
        %415 = vmatprep.subr.mxu0 0.0
        %416 = vmatpush2.msra.mxu0 0.0
        %417 = vmatprep.mubr.f32.mxu0 0.0
        %418 = vmatmul.mubr.f32.gmra.mxu0 %v328
        %v419 = vpop.f32.mrf.mxu0
        %v420 = vadd.f32 %v351, %v419
        %v421 = vpop.f32.mrf.mxu0
        %422 = vmatprep.mubr.f32.mxu0 0.0
        %423 = vmatmul.mubr.f32.gmra.mxu0 %v329
        %v424 = vpop.f32.mrf.mxu0
        %v425 = vadd.f32 %v351, %v424
        %v426 = vpop.f32.mrf.mxu0
        %427 = vdwg.mxu0
        %v428 = vmax.f32 %v420, 0.0
        %v429 = vmax.f32 %v425, 0.0
        %v430 = vmin.f32 %v428, 6.0
        %v431 = vmin.f32 %v429, 6.0
        %vm434 = vcmask 1040384
        %v435 = vrot.slane %v430, 7
        %v436 = vrot.slane %v431, 7
        %v437 = vsel %vm434, %v435, %v436
        %v441 = vsel %vm434, 0.0, %v435
        %v442 = vsel %vm434, %v436, 0.0
        %v443 = vld [vmem:[%s3] sm:$0x7]
        %v444 = vlaneseq
        %v445 = vshrl.u32 %v444, 7
        %v446 = vsub.s32 0, %v445
        %v447 = vrot.slane %v443, %v446
        %v448 = vmul.f32 %v441, %v447
        %v449 = vmul.f32 %v437, %v447
        %v450 = vadd.f32 %v448, 0.0
        %v451 = vadd.f32 %v449, 0.0
        %v452 = vlaneseq
        %v453 = vshrl.u32 %v452, 7
        %v454 = vsub.s32 1, %v453
        %v455 = vrot.slane %v443, %v454
        %v456 = vmul.f32 %v441, %v455
        %v457 = vmul.f32 %v437, %v455
        %v458 = vmul.f32 %v442, %v455
        %vm462 = vcmask 1046528
        %v463 = vrot.slane %v456, 1
        %v464 = vrot.slane %v457, 1
        %v465 = vsel %vm462, %v463, %v464
        %v466 = vrot.slane %v458, 1
        %v467 = vsel %vm462, %v464, %v466
        %v470 = vadd.f32 %v450, %v465
        %v471 = vadd.f32 %v451, %v467
        %v472 = vlaneseq
        %v473 = vshrl.u32 %v472, 7
        %v474 = vsub.s32 2, %v473
        %v475 = vrot.slane %v443, %v474
        %v476 = vmul.f32 %v441, %v475
        %v477 = vmul.f32 %v437, %v475
        %v478 = vmul.f32 %v442, %v475
        %vm482 = vcmask 1045504
        %v483 = vrot.slane %v476, 2
        %v484 = vrot.slane %v477, 2
        %v485 = vsel %vm482, %v483, %v484
        %v486 = vrot.slane %v478, 2
        %v487 = vsel %vm482, %v484, %v486
        %v490 = vadd.f32 %v470, %v485
        %v491 = vadd.f32 %v471, %v487
        %v492 = vld [vmem:[%s4] sm:$0x1]
        %v494 = vlaneseq
        %v495 = vshrl.u32 %v494, 7
        %v496 = vsub.s32 0, %v495
        %v497 = vrot.slane %v492, %v496
        %v499 = vadd.f32 %v490, %v497
        %v500 = vadd.f32 %v491, %v497
        %v501 = vmax.f32 %v499, 0.0
        %v502 = vmax.f32 %v500, 0.0
        %v503 = vmin.f32 %v501, 6.0
        %v504 = vmin.f32 %v502, 6.0
        %v505 = vld [vmem:[#allocation7] sm:$0xff]
        %v506 = vld [vmem:[#allocation7 + $0x8] sm:$0xff]
        %v507 = vld [vmem:[#allocation7 + $0x10] sm:$0xff]
        %v508 = vld [vmem:[#allocation7 + $0x18] sm:$0xff]
        %v509 = vld [vmem:[#allocation7 + $0x20] sm:$0xff]
        %v510 = vld [vmem:[#allocation7 + $0x28] sm:$0xff]
        %v511 = vld [vmem:[#allocation7 + $0x30] sm:$0xff]
        %v512 = vld [vmem:[#allocation7 + $0x38] sm:$0xff]
        %v513 = vld [vmem:[#allocation7 + $0x40] sm:$0xff]
        %v514 = vld [vmem:[#allocation7 + $0x48] sm:$0xff]
        %v515 = vld [vmem:[#allocation7 + $0x50] sm:$0xff]
        %v516 = vld [vmem:[#allocation7 + $0x58] sm:$0xff]
        %v517 = vld [vmem:[#allocation7 + $0x60] sm:$0xff]
        %v518 = vld [vmem:[#allocation7 + $0x68] sm:$0xff]
        %v519 = vld [vmem:[#allocation7 + $0x70] sm:$0xff]
        %v520 = vld [vmem:[#allocation7 + $0x78] sm:$0xff]
        %v521 = vld [vmem:[%s6] sm:$0x1]
        %v523 = vlaneseq
        %v524 = vshrl.u32 %v523, 7
        %v525 = vsub.s32 0, %v524
        %v526 = vrot.slane %v521, %v525
        %528 = vmatprep.subr.mxu0 0.0
        %529 = vmatpush1.msra.mxu0 %v520
        %530 = vmatprep.subr.mxu0 0.0
        %531 = vmatpush1.msra.mxu0 %v519
        %532 = vmatprep.subr.mxu0 0.0
        %533 = vmatpush1.msra.mxu0 %v518
        %534 = vmatprep.subr.mxu0 0.0
        %535 = vmatpush1.msra.mxu0 %v517
        %536 = vmatprep.subr.mxu0 0.0
        %537 = vmatpush1.msra.mxu0 %v516
        %538 = vmatprep.subr.mxu0 0.0
        %539 = vmatpush1.msra.mxu0 %v515
        %540 = vmatprep.subr.mxu0 0.0
        %541 = vmatpush1.msra.mxu0 %v514
        %542 = vmatprep.subr.mxu0 0.0
        %543 = vmatpush1.msra.mxu0 %v513
        %544 = vmatprep.subr.mxu0 0.0
        %545 = vmatpush1.msra.mxu0 %v512
        %546 = vmatprep.subr.mxu0 0.0
        %547 = vmatpush1.msra.mxu0 %v511
        %548 = vmatprep.subr.mxu0 0.0
        %549 = vmatpush1.msra.mxu0 %v510
        %550 = vmatprep.subr.mxu0 0.0
        %551 = vmatpush1.msra.mxu0 %v509
        %552 = vmatprep.subr.mxu0 0.0
        %553 = vmatpush1.msra.mxu0 %v508
        %554 = vmatprep.subr.mxu0 0.0
        %555 = vmatpush1.msra.mxu0 %v507
        %556 = vmatprep.subr.mxu0 0.0
        %557 = vmatpush1.msra.mxu0 %v506
        %558 = vmatprep.subr.mxu0 0.0
        %559 = vmatpush1.msra.mxu0 %v505
        %560 = vmatprep.subr.mxu0 0.0
        %561 = vmatpush2.msra.mxu0 0.0
        %562 = vmatprep.subr.mxu0 0.0
        %563 = vmatpush2.msra.mxu0 0.0
        %564 = vmatprep.subr.mxu0 0.0
        %565 = vmatpush2.msra.mxu0 0.0
        %566 = vmatprep.subr.mxu0 0.0
        %567 = vmatpush2.msra.mxu0 0.0
        %568 = vmatprep.subr.mxu0 0.0
        %569 = vmatpush2.msra.mxu0 0.0
        %570 = vmatprep.subr.mxu0 0.0
        %571 = vmatpush2.msra.mxu0 0.0
        %572 = vmatprep.subr.mxu0 0.0
        %573 = vmatpush2.msra.mxu0 0.0
        %574 = vmatprep.subr.mxu0 0.0
        %575 = vmatpush2.msra.mxu0 0.0
        %576 = vmatprep.subr.mxu0 0.0
        %577 = vmatpush2.msra.mxu0 0.0
        %578 = vmatprep.subr.mxu0 0.0
        %579 = vmatpush2.msra.mxu0 0.0
        %580 = vmatprep.subr.mxu0 0.0
        %581 = vmatpush2.msra.mxu0 0.0
        %582 = vmatprep.subr.mxu0 0.0
        %583 = vmatpush2.msra.mxu0 0.0
        %584 = vmatprep.subr.mxu0 0.0
        %585 = vmatpush2.msra.mxu0 0.0
        %586 = vmatprep.subr.mxu0 0.0
        %587 = vmatpush2.msra.mxu0 0.0
        %588 = vmatprep.subr.mxu0 0.0
        %589 = vmatpush2.msra.mxu0 0.0
        %590 = vmatprep.subr.mxu0 0.0
        %591 = vmatpush2.msra.mxu0 0.0
        %592 = vmatprep.mubr.f32.mxu0 0.0
        %593 = vmatmul.mubr.f32.gmra.mxu0 %v503
        %v594 = vpop.f32.mrf.mxu0
        %v595 = vadd.f32 %v526, %v594
        %v596 = vpop.f32.mrf.mxu0
        %597 = vmatprep.mubr.f32.mxu0 0.0
        %598 = vmatmul.mubr.f32.gmra.mxu0 %v504
        %v599 = vpop.f32.mrf.mxu0
        %v600 = vadd.f32 %v526, %v599
        %v601 = vpop.f32.mrf.mxu0
        %602 = vdwg.mxu0
        %v603 = vmax.f32 %v595, 0.0
        %v604 = vmax.f32 %v600, 0.0
        %v605 = vmin.f32 %v603, 6.0
        %v606 = vmin.f32 %v604, 6.0
        %v607 = vadd.f32 %v605, %v328
        %v608 = vadd.f32 %v606, %v329
        %609 = vst [vmem:[%s325] sm:$0xff] %v607
        %610 = vst [vmem:[%s325 + $0x8] sm:$0xff] %v608
        %s611 = sand.u32 %s185, 1
        %s612 = scalar_lea.sflag [#allocation4], %s611
        %s613 = sand.u32 %s185, 1
        %s614 = smul.addr %s613, 16
        %s615 = scalar_lea.vmem [#allocation8], %s614
        // Predicated region
        $region61: #{tpu_custom_call.1} parent=47 // pred_check
          %p616 = pneg %p195
        $region62: #{tpu_custom_call.1} parent=47 // pred_check_branch
          %618 = sbr.rel (%p616) target = $region64
        $region63: #{tpu_custom_call.1} parent=47 // pred_region
          %s619 = smul.u32 2, %s25
          %s621 = ssub.s32 256, 256
          %622 = vsyncadd %s612, %s621
          %s623 = smul.addr %s619, 128
          %s624 = scalar_lea.hbm %s7, %s623
          %s625 = sshll.u32 %s615, 4
          %s626 = int_to_ptr.vmem [resolvable:$true] %s625
          %631 = dma.vmem_to_hbm [thread:$0]  %s626, 256, %s624, %s612, 128, 128, 8
        $region64: #{tpu_custom_call.1} parent=47 // pred_fallthru
          _
      $region48: #{tpu_custom_call.1} parent=5 // pred_fallthru
        _
      %p632 = scmp.le.s32.totalorder 2, %s20
      // Predicated region
      $region65: #{tpu_custom_call.1} parent=5 // pred_check
        %p633 = pneg %p632
      $region66: #{tpu_custom_call.1} parent=5 // pred_check_branch
        %635 = sbr.rel (%p633) target = $region68
      $region67: #{tpu_custom_call.1} parent=5 // pred_region
        %s636 = ssub.s32 %s20, 2
        // Predicated region
        $region69: #{tpu_custom_call.1} parent=67 // pred_check
          %p637 = pneg %p201
        $region70: #{tpu_custom_call.1} parent=67 // pred_check_branch
          %639 = sbr.rel (%p637) target = $region72
        $region71: #{tpu_custom_call.1} parent=67 // pred_region
          %s640 = sand.u32 %s186, 1
          %s641 = scalar_lea.sflag [#allocation4], %s640
          %s642 = sand.u32 %s186, 1
          %s643 = smul.addr %s642, 16
          %s644 = scalar_lea.vmem [#allocation8], %s643
          %645 = dma.done %s641, 256
        $region72: #{tpu_custom_call.1} parent=67 // pred_fallthru
          _
      $region68: #{tpu_custom_call.1} parent=5 // pred_fallthru
        _
    $region6: #{tpu_custom_call.1} parent=1 // loop_footer
      %s24 = sadd.s32 1, %s20
    $region7: #{tpu_custom_call.1} parent=1 // loop_footer_branch
      %19 = sbr.rel target = $region3
    $region8: #{tpu_custom_call.1} parent=1 // loop_exit
      _
    %646 = vsyncpa [#allocation3], 1
    %s647 = scalar_lea.sflag [#allocation3], 1
    %648 = vsyncpa %s647, 1
    %649 = vsyncpa [#allocation6], 1
    %650 = vsyncpa [#allocation4], 1
    %s651 = scalar_lea.sflag [#allocation4], 1
    %652 = vsyncpa %s651, 1

</llo_original>
